<compile_context>
chip_gen: v7x
topology: tpu7x:2x2x1
jax: 0.10.0
libtpu: 0.0.40
codegen_flags: <defaults>
</compile_context>

<pallas_src>
import functools

import jax
import jax.numpy as jnp
from jax.experimental import pallas as pl
from jax.experimental.pallas import tpu as pltpu


def _round_up(x, m):
    return (x + m - 1) // m * m


# ---------------------------------------------------------------------------
# Tile-size / VMEM-budget selection (per-generation, via get_tpu_info)
# ---------------------------------------------------------------------------
def _choose_tile(n, d_in_pad, d_out_pad):
    try:
        vmem_cap = int(pltpu.get_tpu_info().vmem_capacity_bytes)
    except Exception:
        vmem_cap = 64 << 20   # v7x per-TensorCore capacity (most restrictive)
    budget = int(vmem_cap * 0.70)     # leave headroom for compiler scratch

    n_pad = _round_up(n, 128)         # minimal lane-dense padding

    def footprint(tm):
        return (2 * tm * n_pad * 1                # int8 A_r tile, double-buffered
                + 2 * n_pad * d_in_pad * 2        # resident H (default double-buffer)
                + 2 * d_in_pad * d_out_pad * 2    # W_r stream, double-buffered
                + 2 * d_in_pad * d_out_pad * 2    # W_self, double-buffered
                + 2 * tm * 4                      # norm tile
                + 2 * tm * d_out_pad * 4          # output, double-buffered (f32 worst case)
                + tm * d_out_pad * 4)             # f32 accumulator scratch

    # Largest dst-row tile that divides Np and fits: bigger tiles get closer
    # to the HBM roofline and amortize the ~0.35 us/step grid overhead.
    tm = 128
    for cand in (512, 256):
        if n_pad % cand == 0 and footprint(cand) <= budget:
            tm = cand
            break
    fp = footprint(tm)
    vmem_limit = int(min(max(int(1.5 * fp) + (8 << 20), 32 << 20), vmem_cap))
    return tm, n_pad, vmem_limit


# ---------------------------------------------------------------------------
# Pallas kernel: one RGCN layer
# ---------------------------------------------------------------------------
def _rgcn_layer_kernel(h_ref, counts_ref, w_ref, wself_ref, norm_ref,
                       out_ref, acc_ref, *, apply_relu, tm):
    """grid = (num_dst_tiles [parallel], num_rels [arbitrary, innermost]).

    h_ref      : (Np, Di)    bf16, VMEM resident   all node features
    counts_ref : (1, tm, Np) int8                   raw edge counts, this dst tile
    w_ref      : (1, Di, Do) bf16                   W_r = sum_b coeff[r,b] V_b (precomputed)
    wself_ref  : (Di, Do)    bf16, VMEM resident    self-loop weight
    norm_ref   : (tm, 1)     f32                    1 / in_degree(dst) for this tile
    out_ref    : (tm, Do)    bf16/f32               output rows for this dst tile
    acc_ref    : (tm, Do)    f32 VMEM scratch       accumulator
    """
    i = pl.program_id(0)          # dst-row tile     (parallel)
    r = pl.program_id(1)          # relation         (reduction, innermost)

    @pl.when(r == 0)
    def _():
        acc_ref[...] = jnp.zeros_like(acc_ref)

    # (counts_r[tile] @ H): int8 stream from HBM, upcast to bf16 in-register
    # (exact for small edge multiplicities), f32 accumulation on the MXU.
    a = counts_ref[0].astype(jnp.bfloat16)                         # (tm, Np)
    ah = jnp.dot(a, h_ref[...], preferred_element_type=jnp.float32)  # (tm, Di)

    # acc += (counts_r @ H) @ W_r   — bf16 operands, f32 accumulation.  The
    # per-dst-row 1/in_degree scale commutes past both matmuls and is applied
    # once, in f32, at finalize.
    acc_ref[...] += jnp.dot(ah.astype(jnp.bfloat16), w_ref[0],
                            preferred_element_type=jnp.float32)

    # Finalize on the last relation step: row-normalize the message sum, add
    # the self-loop term, apply the activation, store lane-dense.
    @pl.when(r == pl.num_programs(1) - 1)
    def _():
        row0 = pl.multiple_of(i * tm, tm)
        h_tile = h_ref[pl.ds(row0, tm), :]                         # (tm, Di)
        res = acc_ref[...] * norm_ref[...] + jnp.dot(
            h_tile, wself_ref[...], preferred_element_type=jnp.float32)
        if apply_relu:
            res = jnp.maximum(res, 0.0)
        out_ref[...] = res.astype(out_ref.dtype)


def rgcn_layer(h_pad, counts_i8, norm_pad, w_rel, w_self, *,
               d_out, tm, apply_relu, out_dtype, vmem_limit):
    """One RGCN layer on padded operands.

    h_pad     : (Np, Di_pad) bf16   padded node features (kept padded between layers)
    counts_i8 : (R, Np, Np)  int8   zero-padded raw edge counts
    norm_pad  : (Np, 1)      f32    1 / in_degree(dst), zero for isolated/padded rows
    w_rel     : (R, Di, Do)  f32    basis-combined relation weights (hoisted)
    w_self    : (Di, Do)     f32    self-loop weight
    returns   : (Np, Do_pad) out_dtype (padded)
    """
    n_pad, d_in_pad = h_pad.shape
    num_rels = counts_i8.shape[0]
    d_in = w_rel.shape[1]
    d_out_pad = _round_up(d_out, 128)
    n_tiles = n_pad // tm

    # Pad weights to lane-dense 128-multiples, cast streaming operands to bf16.
    w_rel_p = (jnp.zeros((num_rels, d_in_pad, d_out_pad), jnp.bfloat16)
               .at[:, :d_in, :d_out].set(w_rel.astype(jnp.bfloat16)))
    wself_p = (jnp.zeros((d_in_pad, d_out_pad), jnp.bfloat16)
               .at[:d_in, :d_out].set(w_self.astype(jnp.bfloat16)))

    flops = int(2 * num_rels * n_pad * n_pad * d_in_pad
                + 2 * num_rels * n_pad * d_in_pad * d_out_pad
                + 2 * n_pad * d_in_pad * d_out_pad)
    bytes_accessed = int(num_rels * n_pad * n_pad                      # int8 counts
                         + n_pad * d_in_pad * 2                        # resident H
                         + n_tiles * num_rels * d_in_pad * d_out_pad * 2  # W_r stream
                         + d_in_pad * d_out_pad * 2                    # W_self
                         + n_pad * 4                                   # norm
                         + n_pad * d_out_pad * jnp.dtype(out_dtype).itemsize)

    kernel = functools.partial(_rgcn_layer_kernel,
                               apply_relu=apply_relu, tm=tm)
    out_p = pl.pallas_call(
        kernel,
        out_shape=jax.ShapeDtypeStruct((n_pad, d_out_pad), out_dtype),
        grid_spec=pltpu.PrefetchScalarGridSpec(
            num_scalar_prefetch=0,
            grid=(n_tiles, num_rels),
            in_specs=[
                pl.BlockSpec((n_pad, d_in_pad), lambda i, r: (0, 0)),        # H (resident)
                pl.BlockSpec((1, tm, n_pad), lambda i, r: (r, i, 0)),        # counts_r tile
                pl.BlockSpec((1, d_in_pad, d_out_pad), lambda i, r: (r, 0, 0)),  # W_r
                pl.BlockSpec((d_in_pad, d_out_pad), lambda i, r: (0, 0)),    # W_self
                pl.BlockSpec((tm, 1), lambda i, r: (i, 0)),                  # norm
            ],
            out_specs=pl.BlockSpec((tm, d_out_pad), lambda i, r: (i, 0)),
            scratch_shapes=[pltpu.VMEM((tm, d_out_pad), jnp.float32)],
        ),
        compiler_params=pltpu.CompilerParams(
            dimension_semantics=("parallel", "arbitrary"),
            vmem_limit_bytes=vmem_limit),
        cost_estimate=pl.CostEstimate(flops=flops, transcendentals=0,
                                      bytes_accessed=bytes_accessed),
    )(h_pad, counts_i8, w_rel_p, wself_p, norm_pad)
    return out_p


# ---------------------------------------------------------------------------
# BaseRGCN equivalent (parameter setup + layer stacking in plain JAX)
# ---------------------------------------------------------------------------
class BaseRGCNPallas:
    def __init__(self, num_nodes, h_dim, out_dim, num_rels, num_bases=-1,
                 num_hidden_layers=1, dropout=0.0, *, key):
        self.num_nodes = num_nodes
        self.h_dim = h_dim
        self.out_dim = out_dim
        self.num_rels = num_rels
        self.num_bases = num_bases if num_bases > 0 else num_rels
        self.num_hidden_layers = num_hidden_layers
        self.dropout = dropout  # 0 in the module default
        # TODO(synk): dropout > 0 (training-mode Bernoulli masking) not wired in.

        keys = jax.random.split(key, 1 + 3 * num_hidden_layers)
        scale = 1.0 / jnp.sqrt(jnp.float32(h_dim))

        # input layer: node-id embedding (EmbeddingLayer in linkpredict.py)
        self.embedding = (scale * jax.random.normal(
            keys[0], (num_nodes, h_dim), jnp.float32))

        # hidden layers: basis-decomposed RelGraphConv weights + self-loop
        self.layers = []
        for idx in range(num_hidden_layers):
            k_c, k_b, k_s = keys[1 + 3 * idx: 4 + 3 * idx]
            d_out = out_dim if idx == num_hidden_layers - 1 else h_dim
            coeff = scale * jax.random.normal(
                k_c, (num_rels, self.num_bases), jnp.float32)
            bases = scale * jax.random.normal(
                k_b, (self.num_bases, h_dim, d_out), jnp.float32)
            w_self = scale * jax.random.normal(
                k_s, (h_dim, d_out), jnp.float32)
            self.layers.append((coeff, bases, w_self))

    def forward(self, node_ids, counts):
        """counts: (R, N, N) raw per-relation edge counts (float, integer-valued)."""
        # input layer: g.ndata['h'] = embedding(g.ndata['id'])   (glue)
        h = self.embedding[node_ids]
        n = h.shape[0]
        num_rels = counts.shape[0]

        # shared in-degree edge normalization, kept in f32 and applied in-kernel
        in_deg = counts.sum(axis=(0, 2))
        norm = jnp.where(in_deg > 0, 1.0 / jnp.maximum(in_deg, 1.0), 0.0)

        d_in_pad = _round_up(self.h_dim, 128)
        d_out_pad_max = _round_up(max(self.h_dim, self.out_dim), 128)
        tm, n_pad, vmem_limit = _choose_tile(n, d_in_pad, d_out_pad_max)

        # Raw counts in int8 (exact, half the HBM bytes of bf16); padded once.
        # TODO(synk): saturate / widen if any edge multiplicity exceeds 127.
        counts_i8 = (jnp.zeros((num_rels, n_pad, n_pad), jnp.int8)
                     .at[:, :n, :n].set(counts.astype(jnp.int8)))
        norm_p = (jnp.zeros((n_pad, 1), jnp.float32)
                  .at[:n, 0].set(norm.astype(jnp.float32)))

        # H stays padded / bf16 between layers (no per-layer slice + re-pad).
        h_p = (jnp.zeros((n_pad, d_in_pad), jnp.bfloat16)
               .at[:n, :self.h_dim].set(h.astype(jnp.bfloat16)))

        for idx, (coeff, bases, w_self) in enumerate(self.layers):
            is_last = idx == self.num_hidden_layers - 1
            d_out = self.out_dim if is_last else self.h_dim
            # basis combination hoisted out of the kernel (one tiny matmul)
            w_rel = jnp.einsum("rb,bio->rio", coeff, bases)
            h_p = rgcn_layer(
                h_p, counts_i8, norm_p, w_rel, w_self,
                d_out=d_out, tm=tm,
                apply_relu=not is_last,                     # as in linkpredict.py
                out_dtype=jnp.float32 if is_last else jnp.bfloat16,
                vmem_limit=vmem_limit)
        return h_p[:n, :self.out_dim]                        # g.ndata.pop('h')


def _reference_forward(model, node_ids, adj):
    h = model.embedding[node_ids]
    hp = jax.lax.Precision.HIGHEST
    for idx, (coeff, bases, w_self) in enumerate(model.layers):
        w_rel = jnp.einsum("rb,bio->rio", coeff, bases, precision=hp)
        msg = jnp.einsum("rij,jk,rko->io", adj, h, w_rel, precision=hp)
        h_new = msg + jnp.dot(h, w_self, precision=hp)
        if idx < model.num_hidden_layers - 1:
            h_new = jnp.maximum(h_new, 0.0)
        h = h_new
    return h


# ---------------------------------------------------------------------------
if __name__ == "__main__":
    num_nodes = 64
    h_dim = 32
    out_dim = 32
    num_rels = 4
    num_bases = 2
    num_hidden_layers = 2
    num_edges = 256

    key = jax.random.PRNGKey(0)
    k_model, k_src, k_dst, k_rel = jax.random.split(key, 4)

    # synthetic heterogeneous graph (edge_src / edge_dst / edge_types)
    src = jax.random.randint(k_src, (num_edges,), 0, num_nodes)
    dst = jax.random.randint(k_dst, (num_edges,), 0, num_nodes)
    rel = jax.random.randint(k_rel, (num_edges,), 0, num_rels)

    # raw per-relation edge counts + in-degree normalization (reference only)
    counts = jnp.zeros((num_rels, num_nodes, num_nodes), jnp.float32)
    counts = counts.at[rel, dst, src].add(1.0)
    in_deg = counts.sum(axis=(0, 2))
    norm = jnp.where(in_deg > 0, 1.0 / jnp.maximum(in_deg, 1.0), 0.0)
    adj = counts * norm[None, :, None]                     # (R, N, N) normalized

    node_ids = jnp.arange(num_nodes, dtype=jnp.int32)      # g.ndata['id']

    model = BaseRGCNPallas(num_nodes, h_dim, out_dim, num_rels,
                           num_bases=num_bases,
                           num_hidden_layers=num_hidden_layers,
                           dropout=0.0, key=k_model)

    out = model.forward(node_ids, counts)
    out = jax.block_until_ready(out)

    ref = jax.block_until_ready(_reference_forward(model, node_ids, adj))
    assert out.shape == (num_nodes, out_dim)
    # bf16 operands with f32 accumulation (exact int8 counts + f32 norm) vs
    # the all-f32 HIGHEST-precision reference.
    assert jnp.allclose(out, ref, rtol=5e-2, atol=2e-2)

    print("KERNEL_OK")
</pallas_src>

<mosaic_0001>
module attributes {stable_mosaic.version = 11 : i64} {
  func.func @_rgcn_layer_kernel(%arg0: i32, %arg1: i32, %arg2: memref<128x128xbf16, #tpu.memory_space<vmem>>, %arg3: memref<1x128x128xi8, #tpu.memory_space<vmem>>, %arg4: memref<1x128x128xbf16, #tpu.memory_space<vmem>>, %arg5: memref<128x128xbf16, #tpu.memory_space<vmem>>, %arg6: memref<128x1xf32, #tpu.memory_space<vmem>>, %arg7: memref<128x128xbf16, #tpu.memory_space<vmem>>, %arg8: memref<128x128xf32, #tpu.memory_space<vmem>>) attributes {dimension_semantics = [#tpu.dimension_semantics<parallel>, #tpu.dimension_semantics<arbitrary>], iteration_bounds = array<i64: 1, 4>, scalar_prefetch = 0 : i64, scratch_operands = 1 : i64, tpu.core_type = #tpu.core_type<tc>, window_params = [{pipeline_mode = #tpu.pipeline_mode<synchronous>, transform_indices = @transform_0, window_bounds = array<i64: 128, 128>}, {transform_indices = @transform_1, window_bounds = array<i64: 1, 128, 128>}, {transform_indices = @transform_2, window_bounds = array<i64: 1, 128, 128>}, {pipeline_mode = #tpu.pipeline_mode<synchronous>, transform_indices = @transform_3, window_bounds = array<i64: 128, 128>}, {transform_indices = @transform_4, window_bounds = array<i64: 128, 1>}, {transform_indices = @transform_5, window_bounds = array<i64: 128, 128>}]} {
    %c0_i32 = arith.constant 0 : i32
    %0 = arith.cmpi eq, %arg1, %c0_i32 : i32
    %1 = arith.extui %0 : i1 to i32
    %c0_i32_0 = arith.constant 0 : i32
    %2 = arith.cmpi ne, %1, %c0_i32_0 : i32
    scf.if %2 {
      %cst_14 = arith.constant 0.000000e+00 : f32
      %18 = vector.broadcast %cst_14 : f32 to vector<128x128xf32>
      %c0_15 = arith.constant 0 : index
      %c0_16 = arith.constant 0 : index
      %19 = vector.load %arg8[%c0_15, %c0_16] : memref<128x128xf32, #tpu.memory_space<vmem>>, vector<128x128xf32>
      tpu.vector_store %arg8[%c0_15, %c0_16], %18 {strides = array<i32>} : memref<128x128xf32, #tpu.memory_space<vmem>>, vector<128x128xf32>,
    } else {
    }
    %c0 = arith.constant 0 : index
    %c0_1 = arith.constant 0 : index
    %c0_2 = arith.constant 0 : index
    %3 = vector.load %arg3[%c0, %c0_1, %c0_2] : memref<1x128x128xi8, #tpu.memory_space<vmem>>, vector<1x128x128xi8>
    %4 = vector.shape_cast %3 : vector<1x128x128xi8> to vector<128x128xi8>
    %5 = arith.sitofp %4 : vector<128x128xi8> to vector<128x128xbf16>
    %c0_3 = arith.constant 0 : index
    %c0_4 = arith.constant 0 : index
    %6 = vector.load %arg2[%c0_3, %c0_4] : memref<128x128xbf16, #tpu.memory_space<vmem>>, vector<128x128xbf16>
    %cst = arith.constant dense<0.000000e+00> : vector<128x128xf32>
    %7 = tpu.matmul %5, %6, %cst {dimension_numbers = #tpu.dot_dimension_numbers<[1], [0], [0], [1], [0, 0, 1, 1], [], []>} : vector<128x128xbf16>, vector<128x128xbf16>, vector<128x128xf32> -> vector<128x128xf32>
    %c0_5 = arith.constant 0 : index
    %c0_6 = arith.constant 0 : index
    %8 = vector.load %arg8[%c0_5, %c0_6] : memref<128x128xf32, #tpu.memory_space<vmem>>, vector<128x128xf32>
    %9 = arith.truncf %7 : vector<128x128xf32> to vector<128x128xbf16>
    %c0_7 = arith.constant 0 : index
    %c0_8 = arith.constant 0 : index
    %c0_9 = arith.constant 0 : index
    %10 = vector.load %arg4[%c0_7, %c0_8, %c0_9] : memref<1x128x128xbf16, #tpu.memory_space<vmem>>, vector<1x128x128xbf16>
    %11 = vector.shape_cast %10 : vector<1x128x128xbf16> to vector<128x128xbf16>
    %cst_10 = arith.constant dense<0.000000e+00> : vector<128x128xf32>
    %12 = tpu.matmul %9, %11, %cst_10 {dimension_numbers = #tpu.dot_dimension_numbers<[1], [0], [0], [1], [0, 0, 1, 1], [], []>} : vector<128x128xbf16>, vector<128x128xbf16>, vector<128x128xf32> -> vector<128x128xf32>
    %13 = arith.addf %8, %12 : vector<128x128xf32>
    %c0_11 = arith.constant 0 : index
    %c0_12 = arith.constant 0 : index
    %14 = vector.load %arg8[%c0_11, %c0_12] : memref<128x128xf32, #tpu.memory_space<vmem>>, vector<128x128xf32>
    tpu.vector_store %arg8[%c0_11, %c0_12], %13 {strides = array<i32>} : memref<128x128xf32, #tpu.memory_space<vmem>>, vector<128x128xf32>,
    %c3_i32 = arith.constant 3 : i32
    %15 = arith.cmpi eq, %arg1, %c3_i32 : i32
    %16 = arith.extui %15 : i1 to i32
    %c0_i32_13 = arith.constant 0 : i32
    %17 = arith.cmpi ne, %16, %c0_i32_13 : i32
    scf.if %17 {
      %c128_i32 = arith.constant 128 : i32
      %18 = arith.muli %arg0, %c128_i32 : i32
      %19 = tpu.assume_multiple %18, 128 : i32
      %20 = arith.index_cast %19 : i32 to index
      %c0_14 = arith.constant 0 : index
      %21 = vector.load %arg2[%20, %c0_14] : memref<128x128xbf16, #tpu.memory_space<vmem>>, vector<128x128xbf16>
      %c0_15 = arith.constant 0 : index
      %c0_16 = arith.constant 0 : index
      %22 = vector.load %arg8[%c0_15, %c0_16] : memref<128x128xf32, #tpu.memory_space<vmem>>, vector<128x128xf32>
      %c0_17 = arith.constant 0 : index
      %c0_18 = arith.constant 0 : index
      %23 = vector.load %arg6[%c0_17, %c0_18] : memref<128x1xf32, #tpu.memory_space<vmem>>, vector<128x1xf32>
      %24 = vector.broadcast %23 : vector<128x1xf32> to vector<128x128xf32>
      %25 = arith.mulf %22, %24 : vector<128x128xf32>
      %c0_19 = arith.constant 0 : index
      %c0_20 = arith.constant 0 : index
      %26 = vector.load %arg5[%c0_19, %c0_20] : memref<128x128xbf16, #tpu.memory_space<vmem>>, vector<128x128xbf16>
      %cst_21 = arith.constant dense<0.000000e+00> : vector<128x128xf32>
      %27 = tpu.matmul %21, %26, %cst_21 {dimension_numbers = #tpu.dot_dimension_numbers<[1], [0], [0], [1], [0, 0, 1, 1], [], []>} : vector<128x128xbf16>, vector<128x128xbf16>, vector<128x128xf32> -> vector<128x128xf32>
      %28 = arith.addf %25, %27 : vector<128x128xf32>
      %cst_22 = arith.constant 0.000000e+00 : f32
      %29 = vector.broadcast %cst_22 : f32 to vector<128x128xf32>
      %30 = arith.maximumf %28, %29 : vector<128x128xf32>
      %31 = arith.truncf %30 : vector<128x128xf32> to vector<128x128xbf16>
      %c0_23 = arith.constant 0 : index
      %c0_24 = arith.constant 0 : index
      %32 = vector.load %arg7[%c0_23, %c0_24] : memref<128x128xbf16, #tpu.memory_space<vmem>>, vector<128x128xbf16>
      tpu.vector_store %arg7[%c0_23, %c0_24], %31 {strides = array<i32>} : memref<128x128xbf16, #tpu.memory_space<vmem>>, vector<128x128xbf16>,
    } else {
    }
    return
  }
  func.func @transform_0(%arg0: i32, %arg1: i32) -> (i32, i32) {
    %c0_i32 = arith.constant 0 : i32
    %c0_i32_0 = arith.constant 0 : i32
    %c0_i32_1 = arith.constant 0 : i32
    return %c0_i32, %c0_i32_0 : i32, i32
  }
  func.func @transform_1(%arg0: i32, %arg1: i32) -> (i32, i32, i32) {
    %c0_i32 = arith.constant 0 : i32
    %c0_i32_0 = arith.constant 0 : i32
    return %arg1, %arg0, %c0_i32 : i32, i32, i32
  }
  func.func @transform_2(%arg0: i32, %arg1: i32) -> (i32, i32, i32) {
    %c0_i32 = arith.constant 0 : i32
    %c0_i32_0 = arith.constant 0 : i32
    %c0_i32_1 = arith.constant 0 : i32
    return %arg1, %c0_i32, %c0_i32_0 : i32, i32, i32
  }
  func.func @transform_3(%arg0: i32, %arg1: i32) -> (i32, i32) {
    %c0_i32 = arith.constant 0 : i32
    %c0_i32_0 = arith.constant 0 : i32
    %c0_i32_1 = arith.constant 0 : i32
    return %c0_i32, %c0_i32_0 : i32, i32
  }
  func.func @transform_4(%arg0: i32, %arg1: i32) -> (i32, i32) {
    %c0_i32 = arith.constant 0 : i32
    %c0_i32_0 = arith.constant 0 : i32
    return %arg0, %c0_i32 : i32, i32
  }
  func.func @transform_5(%arg0: i32, %arg1: i32) -> (i32, i32) {
    %c0_i32 = arith.constant 0 : i32
    %c0_i32_0 = arith.constant 0 : i32
    return %arg0, %c0_i32 : i32, i32
  }
}

</mosaic_0001>

<llo_original>
// kernel: tpu_custom_call.1
$region0: #{tpu_custom_call.1}
  #allocation0 [shape = 'u32[]', space=smem, size = 0x4, offset = 0x4, fixed_abs, tag = 'smem constant byte address 0x4 - core index']
  #allocation1 [shape = 'u32[144,128]{1,0:T(1,128)}', space=vmem, size = 0x12000, scoped, tag = 'internal scratch']
  #allocation2 [shape = 'f32[128,128]{1,0:T(8,128)}', space=vmem, size = 0x10000, scoped, tag = 'scratch operand']
  %s0 = inlined_call_operand.hbm [shape: bf16[128,128], index: 0, kind: input, shape index: {}]
  %s1 = inlined_call_operand.vmem [shape: s8[4,128,128], index: 1, kind: input, shape index: {}]
  %s2 = inlined_call_operand.hbm [shape: bf16[4,128,128], index: 2, kind: input, shape index: {}]
  %s3 = inlined_call_operand.hbm [shape: bf16[128,128], index: 3, kind: input, shape index: {}]
  %s4 = inlined_call_operand.vmem [shape: f32[128,1], index: 4, kind: input, shape index: {}]
  %s5 = inlined_call_operand.hbm [shape: bf16[128,128], index: 5, kind: output, shape index: {}]
  %s6 = sld [smem:[#allocation0]]
  $region73: #{tpu_custom_call.1} parent=0
    _
  %s8 = ssub.s32 1, %s6
  %s9 = scalar_select 0, %s8, %s6
  $region1: #{tpu_custom_call.1} parent=0
    #allocation3 [shape = 'u8[32768]{0}', space=vmem, size = 0x8000, scoped, tag = 'input window, operand 0, single buffered']
    #allocation4 [shape = 's32[2]{0}', space=sflag, size = 0x8, scoped, tag = 'scoped memory for tpu_custom_call.1']
    #allocation5 [shape = 's32[2]{0}', space=sflag, size = 0x8, scoped, tag = 'scoped memory for tpu_custom_call.1']
    #allocation6 [shape = 'u8[65536]{0}', space=vmem, size = 0x10000, scoped, tag = 'input window, operand 2']
    #allocation7 [shape = 's32[2]{0}', space=sflag, size = 0x8, scoped, tag = 'scoped memory for tpu_custom_call.1']
    #allocation8 [shape = 'u8[32768]{0}', space=vmem, size = 0x8000, scoped, tag = 'input window, operand 3, single buffered']
    #allocation9 [shape = 'u8[32768]{0}', space=vmem, size = 0x8000, scoped, tag = 'output window, operand 0, single buffered']
    %10 = vsyncpa [#allocation4], 0
    %11 = vsyncpa [#allocation7], 0
    %s12 = scalar_lea.sflag [#allocation7], 1
    %13 = vsyncpa %s12, 0
    %14 = vsyncpa [#allocation5], 0
    loop: start=0, step=1, limit=6
    $region2: #{tpu_custom_call.1} parent=1 // loop_pre_header
      _
    $region3: #{tpu_custom_call.1} parent=1 // loop_header
      %s16 = sphi 0, %s20
      %p17 = scmp.ge.s32.totalorder %s16, 6
      %s23 = sphi 0, %s35
      %s24 = sphi 0, %s31
      %s25 = sphi 0, %s23
      %s26 = sphi 0, %s24
      %s27 = sphi 0, %s25
      %s28 = sphi 0, %s26
      %s36 = sphi 0, %s36
      %s38 = sphi 0, %s36
      %s39 = sphi 0, %s38
      %s53 = sphi 0, %s39
      %s61 = sphi 0, %s63
      %s64 = sphi 0, %s61
      %s65 = sphi 0, %s64
      %s81 = sphi 0, %s65
      %s87 = sphi 0, %s89
      %s90 = sphi 0, %s87
      %s91 = sphi 0, %s90
      %s107 = sphi 0, %s91
      %s111 = sphi 0, %s111
      %s113 = sphi 0, %s111
      %s114 = sphi 0, %s113
      %s128 = sphi 0, %s114
      %s134 = sphi 0, %s136
      %s137 = sphi 0, %s134
      %s138 = sphi 0, %s137
      %s154 = sphi 0, %s138
      %s160 = sphi 0, %s162
      %s163 = sphi 0, %s160
      %s164 = sphi 0, %s163
      %s180 = sphi 0, %s164
    $region4: #{tpu_custom_call.1} parent=1 // loop_header_branch
      %19 = sbr.rel (%p17) target = $region8
    $region5: #{tpu_custom_call.1} parent=1 // loop_body
      %s21 = ssub.s32 %s16, 1
      %s22 = ssub.s32 %s16, 2
      %s29 = sadd.s32 1, %s24
      %p30 = scmp.ge.s32.totalorder %s29, 4
      %s31 = scalar_select %p30, 0, %s29
      %s32 = sadd.s32 1, %s23
      %s33 = scalar_select %p30, %s32, %s23
      %p34 = scmp.ge.s32.totalorder %s33, 1
      %s35 = scalar_select %p34, 0, %s33
      %s37 = sadd.s32 %s36, 1
      %p40 = scmp.eq.s32.totalorder %s16, 3
      %p41 = scmp.ne.s32.totalorder %s36, %s38
      %p42 = scmp.eq.s32.totalorder %s16, 0
      %p43 = por %p41, %p42
      %p44 = scmp.ne.s32.totalorder %s36, %s38
      %p45 = scmp.eq.s32.totalorder %s21, 3
      %p46 = por %p44, %p45
      %p47 = scmp.ne.s32.totalorder %s38, %s39
      %p48 = scmp.eq.s32.totalorder %s21, 0
      %p49 = por %p47, %p48
      %p50 = scmp.ne.s32.totalorder %s38, %s39
      %p51 = scmp.eq.s32.totalorder %s22, 3
      %p52 = por %p50, %p51
      %p54 = scmp.ne.s32.totalorder %s39, %s53
      %p55 = scmp.eq.s32.totalorder %s22, 0
      %p56 = por %p54, %p55
      %s57 = ssub.s32 %s24, %s31
      %s58 = ssub.s32 %s23, %s35
      %s59 = sor.u32 %s57, %s58
      %p60 = scmp.eq.s32.totalorder %s59, 0
      %s62 = sadd.s32 %s61, 1
      %s63 = scalar_select %p60, %s61, %s62
      %p66 = pneg %p60
      %p67 = scmp.eq.s32.totalorder %s16, 3
      %p68 = por %p66, %p67
      %p69 = scmp.ne.s32.totalorder %s61, %s64
      %p70 = scmp.eq.s32.totalorder %s16, 0
      %p71 = por %p69, %p70
      %p72 = scmp.ne.s32.totalorder %s61, %s64
      %p73 = scmp.eq.s32.totalorder %s21, 3
      %p74 = por %p72, %p73
      %p75 = scmp.ne.s32.totalorder %s64, %s65
      %p76 = scmp.eq.s32.totalorder %s21, 0
      %p77 = por %p75, %p76
      %p78 = scmp.ne.s32.totalorder %s64, %s65
      %p79 = scmp.eq.s32.totalorder %s22, 3
      %p80 = por %p78, %p79
      %p82 = scmp.ne.s32.totalorder %s65, %s81
      %p83 = scmp.eq.s32.totalorder %s22, 0
      %p84 = por %p82, %p83
      %s85 = ssub.s32 %s24, %s31
      %p86 = scmp.eq.s32.totalorder %s85, 0
      %s88 = sadd.s32 %s87, 1
      %s89 = scalar_select %p86, %s87, %s88
      %p92 = pneg %p86
      %p93 = scmp.eq.s32.totalorder %s16, 3
      %p94 = por %p92, %p93
      %p95 = scmp.ne.s32.totalorder %s87, %s90
      %p96 = scmp.eq.s32.totalorder %s16, 0
      %p97 = por %p95, %p96
      %p98 = scmp.ne.s32.totalorder %s87, %s90
      %p99 = scmp.eq.s32.totalorder %s21, 3
      %p100 = por %p98, %p99
      %p101 = scmp.ne.s32.totalorder %s90, %s91
      %p102 = scmp.eq.s32.totalorder %s21, 0
      %p103 = por %p101, %p102
      %p104 = scmp.ne.s32.totalorder %s90, %s91
      %p105 = scmp.eq.s32.totalorder %s22, 3
      %p106 = por %p104, %p105
      %p108 = scmp.ne.s32.totalorder %s91, %s107
      %p109 = scmp.eq.s32.totalorder %s22, 0
      %p110 = por %p108, %p109
      %s112 = sadd.s32 %s111, 1
      %p115 = scmp.eq.s32.totalorder %s16, 3
      %p116 = scmp.ne.s32.totalorder %s111, %s113
      %p117 = scmp.eq.s32.totalorder %s16, 0
      %p118 = por %p116, %p117
      %p119 = scmp.ne.s32.totalorder %s111, %s113
      %p120 = scmp.eq.s32.totalorder %s21, 3
      %p121 = por %p119, %p120
      %p122 = scmp.ne.s32.totalorder %s113, %s114
      %p123 = scmp.eq.s32.totalorder %s21, 0
      %p124 = por %p122, %p123
      %p125 = scmp.ne.s32.totalorder %s113, %s114
      %p126 = scmp.eq.s32.totalorder %s22, 3
      %p127 = por %p125, %p126
      %p129 = scmp.ne.s32.totalorder %s114, %s128
      %p130 = scmp.eq.s32.totalorder %s22, 0
      %p131 = por %p129, %p130
      %s132 = ssub.s32 %s23, %s35
      %p133 = scmp.eq.s32.totalorder %s132, 0
      %s135 = sadd.s32 %s134, 1
      %s136 = scalar_select %p133, %s134, %s135
      %p139 = pneg %p133
      %p140 = scmp.eq.s32.totalorder %s16, 3
      %p141 = por %p139, %p140
      %p142 = scmp.ne.s32.totalorder %s134, %s137
      %p143 = scmp.eq.s32.totalorder %s16, 0
      %p144 = por %p142, %p143
      %p145 = scmp.ne.s32.totalorder %s134, %s137
      %p146 = scmp.eq.s32.totalorder %s21, 3
      %p147 = por %p145, %p146
      %p148 = scmp.ne.s32.totalorder %s137, %s138
      %p149 = scmp.eq.s32.totalorder %s21, 0
      %p150 = por %p148, %p149
      %p151 = scmp.ne.s32.totalorder %s137, %s138
      %p152 = scmp.eq.s32.totalorder %s22, 3
      %p153 = por %p151, %p152
      %p155 = scmp.ne.s32.totalorder %s138, %s154
      %p156 = scmp.eq.s32.totalorder %s22, 0
      %p157 = por %p155, %p156
      %s158 = ssub.s32 %s23, %s35
      %p159 = scmp.eq.s32.totalorder %s158, 0
      %s161 = sadd.s32 %s160, 1
      %s162 = scalar_select %p159, %s160, %s161
      %p165 = pneg %p159
      %p166 = scmp.eq.s32.totalorder %s16, 3
      %p167 = por %p165, %p166
      %p168 = scmp.ne.s32.totalorder %s160, %s163
      %p169 = scmp.eq.s32.totalorder %s16, 0
      %p170 = por %p168, %p169
      %p171 = scmp.ne.s32.totalorder %s160, %s163
      %p172 = scmp.eq.s32.totalorder %s21, 3
      %p173 = por %p171, %p172
      %p174 = scmp.ne.s32.totalorder %s163, %s164
      %p175 = scmp.eq.s32.totalorder %s21, 0
      %p176 = por %p174, %p175
      %p177 = scmp.ne.s32.totalorder %s163, %s164
      %p178 = scmp.eq.s32.totalorder %s22, 3
      %p179 = por %p177, %p178
      %p181 = scmp.ne.s32.totalorder %s164, %s180
      %p182 = scmp.eq.s32.totalorder %s22, 0
      %p183 = por %p181, %p182
      %p184 = scmp.le.s32.totalorder 1, %s16
      %p185 = scmp.lt.s32.totalorder %s16, 5
      %p186 = pnand %p184, %p185
      %p187 = pneg %p186
      // Predicated region
      $region9: #{tpu_custom_call.1} parent=5 // pred_check
        _
      $region10: #{tpu_custom_call.1} parent=5 // pred_check_branch
        %189 = sbr.rel (%p186) target = $region12
      $region11: #{tpu_custom_call.1} parent=5 // pred_region
        %s190 = ssub.s32 %s16, 1
        // Predicated region
        $region13: #{tpu_custom_call.1} parent=11 // pred_check
          %p191 = pneg %p49
        $region14: #{tpu_custom_call.1} parent=11 // pred_check_branch
          %193 = sbr.rel (%p191) target = $region16
        $region15: #{tpu_custom_call.1} parent=11 // pred_region
          %s195 = ssub.s32 1024, 1024
          %196 = vsyncadd [#allocation4], %s195
          %s197 = sshll.u32 [#allocation3], 4
          %s198 = int_to_ptr.vmem [resolvable:$true] %s197
          %203 = dma.hbm_to_vmem [thread:$0]  %s0, 1024, %s198, [#allocation4], 64, 64, 4
        $region16: #{tpu_custom_call.1} parent=11 // pred_fallthru
          _
        // Predicated region
        $region17: #{tpu_custom_call.1} parent=11 // pred_check
          %p204 = pneg %p124
        $region18: #{tpu_custom_call.1} parent=11 // pred_check_branch
          %206 = sbr.rel (%p204) target = $region20
        $region19: #{tpu_custom_call.1} parent=11 // pred_region
          %s208 = ssub.s32 1024, 1024
          %209 = vsyncadd [#allocation7], %s208
          %s210 = sshll.u32 [#allocation8], 4
          %s211 = int_to_ptr.vmem [resolvable:$true] %s210
          %216 = dma.hbm_to_vmem [thread:$0]  %s3, 1024, %s211, [#allocation7], 64, 64, 4
        $region20: #{tpu_custom_call.1} parent=11 // pred_fallthru
          _
        // Predicated region
        $region21: #{tpu_custom_call.1} parent=11 // pred_check
          %p217 = pneg %p150
        $region22: #{tpu_custom_call.1} parent=11 // pred_check_branch
          %219 = sbr.rel (%p217) target = $region24
        $region23: #{tpu_custom_call.1} parent=11 // pred_region
          %s220 = smul.u32 16, %s25
          %p221 = scmp.lt.s32.totalorder %s220, 15
          %s222 = scalar_select %p221, %s220, 15
          %s223 = smul.addr %s222, 8
          %s224 = scalar_lea.vmem %s4, %s223
          %s225 = smul.u32 16, %s25
        $region24: #{tpu_custom_call.1} parent=11 // pred_fallthru
          _
      $region12: #{tpu_custom_call.1} parent=5 // pred_fallthru
        _
      %p226 = scmp.lt.s32.totalorder %s16, 4
      // Predicated region
      $region25: #{tpu_custom_call.1} parent=5 // pred_check
        %p227 = pneg %p226
      $region26: #{tpu_custom_call.1} parent=5 // pred_check_branch
        %229 = sbr.rel (%p227) target = $region28
      $region27: #{tpu_custom_call.1} parent=5 // pred_region
        // Predicated region
        $region29: #{tpu_custom_call.1} parent=27 // pred_check
          %p230 = pneg %p71
        $region30: #{tpu_custom_call.1} parent=27 // pred_check_branch
          %232 = sbr.rel (%p230) target = $region32
        $region31: #{tpu_custom_call.1} parent=27 // pred_region
          %s233 = smul.u32 4, %s23
          %p234 = scmp.lt.s32.totalorder %s24, 3
          %s235 = scalar_select %p234, %s24, 3
          %p236 = scmp.lt.s32.totalorder %s233, 3
          %s237 = scalar_select %p236, %s233, 3
          %s238 = smul.addr %s235, 4
          %s239 = sadd.s32 %s237, %s238
          %s240 = smul.addr %s239, 8
          %s241 = scalar_lea.vmem %s1, %s240
          %s242 = smul.u32 4, %s23
        $region32: #{tpu_custom_call.1} parent=27 // pred_fallthru
          _
        // Predicated region
        $region33: #{tpu_custom_call.1} parent=27 // pred_check
          %p243 = pneg %p97
        $region34: #{tpu_custom_call.1} parent=27 // pred_check_branch
          %245 = sbr.rel (%p243) target = $region36
        $region35: #{tpu_custom_call.1} parent=27 // pred_region
          %s246 = sand.u32 %s16, 1
          %s247 = scalar_lea.sflag [#allocation7], %s246
          %s248 = sand.u32 %s87, 1
          %s249 = smul.addr %s248, 64
          %s250 = scalar_lea.vmem [#allocation6], %s249
          %s252 = ssub.s32 1024, 1024
          %253 = vsyncadd %s247, %s252
          %s254 = smul.addr %s24, 16
          %s255 = smul.addr %s254, 64
          %s256 = scalar_lea.hbm %s2, %s255
          %s257 = sshll.u32 %s250, 4
          %s258 = int_to_ptr.vmem [resolvable:$true] %s257
          %263 = dma.hbm_to_vmem [thread:$0]  %s256, 1024, %s258, %s247, 64, 64, 4
        $region36: #{tpu_custom_call.1} parent=27 // pred_fallthru
          _
      $region28: #{tpu_custom_call.1} parent=5 // pred_fallthru
        _
      %p264 = scmp.le.s32.totalorder 1, %s16
      %p265 = scmp.lt.s32.totalorder %s16, 5
      %p266 = pnand %p264, %p265
      %p267 = pneg %p266
      // Predicated region
      $region37: #{tpu_custom_call.1} parent=5 // pred_check
        _
      $region38: #{tpu_custom_call.1} parent=5 // pred_check_branch
        %269 = sbr.rel (%p266) target = $region40
      $region39: #{tpu_custom_call.1} parent=5 // pred_region
        %s270 = ssub.s32 %s16, 1
        // Predicated region
        $region41: #{tpu_custom_call.1} parent=39 // pred_check
          %p271 = pneg %p49
        $region42: #{tpu_custom_call.1} parent=39 // pred_check_branch
          %273 = sbr.rel (%p271) target = $region44
        $region43: #{tpu_custom_call.1} parent=39 // pred_region
          %274 = dma.done [#allocation4], 1024
        $region44: #{tpu_custom_call.1} parent=39 // pred_fallthru
          _
        %s275 = sand.u32 %s21, 1
        %s276 = scalar_lea.sflag [#allocation7], %s275
        %s277 = sand.u32 %s90, 1
        %s278 = smul.addr %s277, 64
        %s279 = scalar_lea.vmem [#allocation6], %s278
        // Predicated region
        $region45: #{tpu_custom_call.1} parent=39 // pred_check
          %p280 = pneg %p103
        $region46: #{tpu_custom_call.1} parent=39 // pred_check_branch
          %282 = sbr.rel (%p280) target = $region48
        $region47: #{tpu_custom_call.1} parent=39 // pred_region
          %283 = dma.done %s276, 1024
        $region48: #{tpu_custom_call.1} parent=39 // pred_fallthru
          _
        // Predicated region
        $region49: #{tpu_custom_call.1} parent=39 // pred_check
          %p284 = pneg %p124
        $region50: #{tpu_custom_call.1} parent=39 // pred_check_branch
          %286 = sbr.rel (%p284) target = $region52
        $region51: #{tpu_custom_call.1} parent=39 // pred_region
          %287 = dma.done [#allocation7], 1024
        $region52: #{tpu_custom_call.1} parent=39 // pred_fallthru
          _
        %p288 = pneg %p49
        %p289 = pneg %p46
        %s290 = smul.u32 4, %s25
        %p291 = scmp.lt.s32.totalorder %s26, 3
        %s292 = scalar_select %p291, %s26, 3
        %p293 = scmp.lt.s32.totalorder %s290, 3
        %s294 = scalar_select %p293, %s290, 3
        %s295 = smul.addr %s292, 4
        %s296 = sadd.s32 %s294, %s295
        %s297 = smul.addr %s296, 8
        %s298 = scalar_lea.vmem %s1, %s297
        %p299 = pneg %p77
        %p300 = pneg %p74
        %s301 = sand.u32 %s21, 1
        %s302 = scalar_lea.sflag [#allocation7], %s301
        %s303 = sand.u32 %s90, 1
        %s304 = smul.addr %s303, 64
        %s305 = scalar_lea.vmem [#allocation6], %s304
        %p306 = pneg %p103
        %p307 = pneg %p100
        %p308 = pneg %p124
        %p309 = pneg %p121
        %s310 = smul.u32 16, %s25
        %p311 = scmp.lt.s32.totalorder %s310, 15
        %s312 = scalar_select %p311, %s310, 15
        %s313 = smul.addr %s312, 8
        %s314 = scalar_lea.vmem %s4, %s313
        %p315 = pneg %p150
        %p316 = pneg %p147
        %p317 = pneg %p176
        %p318 = pneg %p173
        %s319 = smul.u32 4, %s25
        %p320 = scmp.lt.s32.totalorder %s26, 3
        %s321 = scalar_select %p320, %s26, 3
        %p322 = scmp.lt.s32.totalorder %s319, 3
        %s323 = scalar_select %p322, %s319, 3
        %s324 = smul.addr %s321, 4
        %s325 = sadd.s32 %s323, %s324
        %s326 = smul.addr %s325, 8
        %s327 = scalar_lea.vmem %s1, %s326
        %s328 = smul.u32 4, %s25
        %s329 = smul.u32 16, %s25
        %p330 = scmp.lt.s32.totalorder %s329, 15
        %s331 = scalar_select %p330, %s329, 15
        %s332 = smul.addr %s331, 8
        %s333 = scalar_lea.vmem %s4, %s332
        %s334 = smul.u32 16, %s25
        %s335 = smul.u32 16, %s25
        %p337 = scmp.eq.s32.totalorder %s26, 0
        // Predicated region
        $region53: #{tpu_custom_call.1} parent=39 // pred_check
          %p338 = pneg %p337
        $region54: #{tpu_custom_call.1} parent=39 // pred_check_branch
          %340 = sbr.rel (%p338) target = $region56
        $region55: #{tpu_custom_call.1} parent=39 // pred_region
          %341 = vst [vmem:[#allocation2] sm:$0xff] 0.0
          %342 = vst [vmem:[#allocation2 + $0x8] sm:$0xff] 0.0
          %343 = vst [vmem:[#allocation2 + $0x10] sm:$0xff] 0.0
          %344 = vst [vmem:[#allocation2 + $0x18] sm:$0xff] 0.0
          %345 = vst [vmem:[#allocation2 + $0x20] sm:$0xff] 0.0
          %346 = vst [vmem:[#allocation2 + $0x28] sm:$0xff] 0.0
          %347 = vst [vmem:[#allocation2 + $0x30] sm:$0xff] 0.0
          %348 = vst [vmem:[#allocation2 + $0x38] sm:$0xff] 0.0
          %349 = vst [vmem:[#allocation2 + $0x40] sm:$0xff] 0.0
          %350 = vst [vmem:[#allocation2 + $0x48] sm:$0xff] 0.0
          %351 = vst [vmem:[#allocation2 + $0x50] sm:$0xff] 0.0
          %352 = vst [vmem:[#allocation2 + $0x58] sm:$0xff] 0.0
          %353 = vst [vmem:[#allocation2 + $0x60] sm:$0xff] 0.0
          %354 = vst [vmem:[#allocation2 + $0x68] sm:$0xff] 0.0
          %355 = vst [vmem:[#allocation2 + $0x70] sm:$0xff] 0.0
          %356 = vst [vmem:[#allocation2 + $0x78] sm:$0xff] 0.0
        $region56: #{tpu_custom_call.1} parent=39 // pred_fallthru
          _
        %v357 = vld [vmem:[%s327] sm:$0xff]
        %v358 = vld [vmem:[%s327 + $0x8] sm:$0xff]
        %v359 = vld [vmem:[%s327 + $0x10] sm:$0xff]
        %v360 = vld [vmem:[%s327 + $0x18] sm:$0xff]
        %v361 = vunpack.c.l.s8.bf16 %v357
        %v362 = vunpack.c.h.s8.bf16 %v357
        %v363 = vunpack.c.l.s8.bf16 %v358
        %v364 = vunpack.c.h.s8.bf16 %v358
        %v365 = vunpack.c.l.s8.bf16 %v359
        %v366 = vunpack.c.h.s8.bf16 %v359
        %v367 = vunpack.c.l.s8.bf16 %v360
        %v368 = vunpack.c.h.s8.bf16 %v360
        %v369 = vld [vmem:[#allocation3] sm:$0xf]
        %v370 = vld [vmem:[#allocation3 + $0x4] sm:$0xf]
        %v371 = vld [vmem:[#allocation3 + $0x8] sm:$0xf]
        %v372 = vld [vmem:[#allocation3 + $0xc] sm:$0xf]
        %v373 = vld [vmem:[#allocation3 + $0x10] sm:$0xf]
        %v374 = vld [vmem:[#allocation3 + $0x14] sm:$0xf]
        %v375 = vld [vmem:[#allocation3 + $0x18] sm:$0xf]
        %v376 = vld [vmem:[#allocation3 + $0x1c] sm:$0xf]
        %v377 = vld [vmem:[#allocation3 + $0x20] sm:$0xf]
        %v378 = vld [vmem:[#allocation3 + $0x24] sm:$0xf]
        %v379 = vld [vmem:[#allocation3 + $0x28] sm:$0xf]
        %v380 = vld [vmem:[#allocation3 + $0x2c] sm:$0xf]
        %v381 = vld [vmem:[#allocation3 + $0x30] sm:$0xf]
        %v382 = vld [vmem:[#allocation3 + $0x34] sm:$0xf]
        %v383 = vld [vmem:[#allocation3 + $0x38] sm:$0xf]
        %v384 = vld [vmem:[#allocation3 + $0x3c] sm:$0xf]
        %v401 = vunpack.c.l.b16 %v369
        %v402 = vunpack.c.l.b16 %v370
        %v403 = vunpack.c.l.b16 %v371
        %v404 = vunpack.c.l.b16 %v372
        %v405 = vunpack.c.l.b16 %v373
        %v406 = vunpack.c.l.b16 %v374
        %v407 = vunpack.c.l.b16 %v375
        %v408 = vunpack.c.l.b16 %v376
        %v409 = vunpack.c.l.b16 %v377
        %v410 = vunpack.c.l.b16 %v378
        %v411 = vunpack.c.l.b16 %v379
        %v412 = vunpack.c.l.b16 %v380
        %v413 = vunpack.c.l.b16 %v381
        %v414 = vunpack.c.l.b16 %v382
        %v415 = vunpack.c.l.b16 %v383
        %v416 = vunpack.c.l.b16 %v384
        %v417 = vpack.c.b16 %v402, %v401
        %v418 = vpack.c.b16 %v404, %v403
        %v419 = vpack.c.b16 %v406, %v405
        %v420 = vpack.c.b16 %v408, %v407
        %v421 = vpack.c.b16 %v410, %v409
        %v422 = vpack.c.b16 %v412, %v411
        %v423 = vpack.c.b16 %v414, %v413
        %v424 = vpack.c.b16 %v416, %v415
        %433 = vmatprep.subr.bf16.mxu0 0
        %434 = vmatpush1.bf16.msra.mxu0 %v417
        %435 = vmatprep.subr.bf16.mxu0 0
        %436 = vmatpush1.bf16.msra.mxu0 %v418
        %437 = vmatprep.subr.bf16.mxu0 0
        %438 = vmatpush1.bf16.msra.mxu0 %v419
        %439 = vmatprep.subr.bf16.mxu0 0
        %440 = vmatpush1.bf16.msra.mxu0 %v420
        %441 = vmatprep.subr.bf16.mxu0 0
        %442 = vmatpush1.bf16.msra.mxu0 %v421
        %443 = vmatprep.subr.bf16.mxu0 0
        %444 = vmatpush1.bf16.msra.mxu0 %v422
        %445 = vmatprep.subr.bf16.mxu0 0
        %446 = vmatpush1.bf16.msra.mxu0 %v423
        %447 = vmatprep.subr.bf16.mxu0 0
        %448 = vmatpush1.bf16.msra.mxu0 %v424
        %449 = vmatprep.subr.bf16.mxu0 0
        %450 = vmatpush1.bf16.msra.mxu0 0
        %451 = vmatprep.subr.bf16.mxu0 0
        %452 = vmatpush1.bf16.msra.mxu0 0
        %453 = vmatprep.subr.bf16.mxu0 0
        %454 = vmatpush1.bf16.msra.mxu0 0
        %455 = vmatprep.subr.bf16.mxu0 0
        %456 = vmatpush1.bf16.msra.mxu0 0
        %457 = vmatprep.subr.bf16.mxu0 0
        %458 = vmatpush1.bf16.msra.mxu0 0
        %459 = vmatprep.subr.bf16.mxu0 0
        %460 = vmatpush1.bf16.msra.mxu0 0
        %461 = vmatprep.subr.bf16.mxu0 0
        %462 = vmatpush1.bf16.msra.mxu0 0
        %463 = vmatprep.subr.bf16.mxu0 0
        %464 = vmatpush1.bf16.msra.mxu0 0
        %465 = vmatprep.mubr.bf16.mxu0 0
        %466 = vmatmul.mubr.bf16.gmra.mrb[0].mxu0 %v361
        %v467 = vpop.f32.mrb[0].mxu0
        %v468 = vadd.f32 0.0, %v467
        %v469 = vpop.f32.mrb[0].mxu0
        %v470 = vpop.f32.mrb[0].mxu0
        %v471 = vadd.f32 0.0, %v470
        %v472 = vpop.f32.mrb[0].mxu0
        %473 = vmatprep.mubr.bf16.mxu0 0
        %474 = vmatmul.mubr.bf16.gmra.mrb[0].mxu0 %v362
        %v475 = vpop.f32.mrb[0].mxu0
        %v476 = vadd.f32 0.0, %v475
        %v477 = vpop.f32.mrb[0].mxu0
        %v478 = vpop.f32.mrb[0].mxu0
        %v479 = vadd.f32 0.0, %v478
        %v480 = vpop.f32.mrb[0].mxu0
        %481 = vmatprep.mubr.bf16.mxu0 0
        %482 = vmatmul.mubr.bf16.gmra.mrb[0].mxu0 %v363
        %v483 = vpop.f32.mrb[0].mxu0
        %v484 = vadd.f32 0.0, %v483
        %v485 = vpop.f32.mrb[0].mxu0
        %v486 = vpop.f32.mrb[0].mxu0
        %v487 = vadd.f32 0.0, %v486
        %v488 = vpop.f32.mrb[0].mxu0
        %489 = vmatprep.mubr.bf16.mxu0 0
        %490 = vmatmul.mubr.bf16.gmra.mrb[0].mxu0 %v364
        %v491 = vpop.f32.mrb[0].mxu0
        %v492 = vadd.f32 0.0, %v491
        %v493 = vpop.f32.mrb[0].mxu0
        %v494 = vpop.f32.mrb[0].mxu0
        %v495 = vadd.f32 0.0, %v494
        %v496 = vpop.f32.mrb[0].mxu0
        %497 = vmatprep.mubr.bf16.mxu0 0
        %498 = vmatmul.mubr.bf16.gmra.mrb[0].mxu0 %v365
        %v499 = vpop.f32.mrb[0].mxu0
        %v500 = vadd.f32 0.0, %v499
        %v501 = vpop.f32.mrb[0].mxu0
        %v502 = vpop.f32.mrb[0].mxu0
        %v503 = vadd.f32 0.0, %v502
        %v504 = vpop.f32.mrb[0].mxu0
        %505 = vmatprep.mubr.bf16.mxu0 0
        %506 = vmatmul.mubr.bf16.gmra.mrb[0].mxu0 %v366
        %v507 = vpop.f32.mrb[0].mxu0
        %v508 = vadd.f32 0.0, %v507
        %v509 = vpop.f32.mrb[0].mxu0
        %v510 = vpop.f32.mrb[0].mxu0
        %v511 = vadd.f32 0.0, %v510
        %v512 = vpop.f32.mrb[0].mxu0
        %513 = vmatprep.mubr.bf16.mxu0 0
        %514 = vmatmul.mubr.bf16.gmra.mrb[0].mxu0 %v367
        %v515 = vpop.f32.mrb[0].mxu0
        %v516 = vadd.f32 0.0, %v515
        %v517 = vpop.f32.mrb[0].mxu0
        %v518 = vpop.f32.mrb[0].mxu0
        %v519 = vadd.f32 0.0, %v518
        %v520 = vpop.f32.mrb[0].mxu0
        %521 = vmatprep.mubr.bf16.mxu0 0
        %522 = vmatmul.mubr.bf16.gmra.mrb[0].mxu0 %v368
        %v523 = vpop.f32.mrb[0].mxu0
        %v524 = vadd.f32 0.0, %v523
        %v525 = vpop.f32.mrb[0].mxu0
        %v526 = vpop.f32.mrb[0].mxu0
        %v527 = vadd.f32 0.0, %v526
        %v528 = vpop.f32.mrb[0].mxu0
        %529 = vdwg.mxu0
        %v530 = vld [vmem:[#allocation2] sm:$0xff]
        %v531 = vld [vmem:[#allocation2 + $0x8] sm:$0xff]
        %v532 = vld [vmem:[#allocation2 + $0x10] sm:$0xff]
        %v533 = vld [vmem:[#allocation2 + $0x18] sm:$0xff]
        %v534 = vld [vmem:[#allocation2 + $0x20] sm:$0xff]
        %v535 = vld [vmem:[#allocation2 + $0x28] sm:$0xff]
        %v536 = vld [vmem:[#allocation2 + $0x30] sm:$0xff]
        %v537 = vld [vmem:[#allocation2 + $0x38] sm:$0xff]
        %v538 = vld [vmem:[#allocation2 + $0x40] sm:$0xff]
        %v539 = vld [vmem:[#allocation2 + $0x48] sm:$0xff]
        %v540 = vld [vmem:[#allocation2 + $0x50] sm:$0xff]
        %v541 = vld [vmem:[#allocation2 + $0x58] sm:$0xff]
        %v542 = vld [vmem:[#allocation2 + $0x60] sm:$0xff]
        %v543 = vld [vmem:[#allocation2 + $0x68] sm:$0xff]
        %v544 = vld [vmem:[#allocation2 + $0x70] sm:$0xff]
        %v545 = vld [vmem:[#allocation2 + $0x78] sm:$0xff]
        %v546 = vpack.c.bf16 %v471, %v468
        %v547 = vpack.c.bf16 %v479, %v476
        %v548 = vpack.c.bf16 %v487, %v484
        %v549 = vpack.c.bf16 %v495, %v492
        %v550 = vpack.c.bf16 %v503, %v500
        %v551 = vpack.c.bf16 %v511, %v508
        %v552 = vpack.c.bf16 %v519, %v516
        %v553 = vpack.c.bf16 %v527, %v524
        %v554 = vld [vmem:[%s279] sm:$0xf]
        %v555 = vld [vmem:[%s279 + $0x4] sm:$0xf]
        %v556 = vld [vmem:[%s279 + $0x8] sm:$0xf]
        %v557 = vld [vmem:[%s279 + $0xc] sm:$0xf]
        %v558 = vld [vmem:[%s279 + $0x10] sm:$0xf]
        %v559 = vld [vmem:[%s279 + $0x14] sm:$0xf]
        %v560 = vld [vmem:[%s279 + $0x18] sm:$0xf]
        %v561 = vld [vmem:[%s279 + $0x1c] sm:$0xf]
        %v562 = vld [vmem:[%s279 + $0x20] sm:$0xf]
        %v563 = vld [vmem:[%s279 + $0x24] sm:$0xf]
        %v564 = vld [vmem:[%s279 + $0x28] sm:$0xf]
        %v565 = vld [vmem:[%s279 + $0x2c] sm:$0xf]
        %v566 = vld [vmem:[%s279 + $0x30] sm:$0xf]
        %v567 = vld [vmem:[%s279 + $0x34] sm:$0xf]
        %v568 = vld [vmem:[%s279 + $0x38] sm:$0xf]
        %v569 = vld [vmem:[%s279 + $0x3c] sm:$0xf]
        %v586 = vunpack.c.l.b16 %v554
        %v587 = vunpack.c.l.b16 %v555
        %v588 = vunpack.c.l.b16 %v556
        %v589 = vunpack.c.l.b16 %v557
        %v590 = vunpack.c.l.b16 %v558
        %v591 = vunpack.c.l.b16 %v559
        %v592 = vunpack.c.l.b16 %v560
        %v593 = vunpack.c.l.b16 %v561
        %v594 = vunpack.c.l.b16 %v562
        %v595 = vunpack.c.l.b16 %v563
        %v596 = vunpack.c.l.b16 %v564
        %v597 = vunpack.c.l.b16 %v565
        %v598 = vunpack.c.l.b16 %v566
        %v599 = vunpack.c.l.b16 %v567
        %v600 = vunpack.c.l.b16 %v568
        %v601 = vunpack.c.l.b16 %v569
        %v602 = vpack.c.b16 %v587, %v586
        %v603 = vpack.c.b16 %v589, %v588
        %v604 = vpack.c.b16 %v591, %v590
        %v605 = vpack.c.b16 %v593, %v592
        %v606 = vpack.c.b16 %v595, %v594
        %v607 = vpack.c.b16 %v597, %v596
        %v608 = vpack.c.b16 %v599, %v598
        %v609 = vpack.c.b16 %v601, %v600
        %618 = vmatprep.subr.bf16.mxu0 0
        %619 = vmatpush1.bf16.msra.mxu0 %v602
        %620 = vmatprep.subr.bf16.mxu0 0
        %621 = vmatpush1.bf16.msra.mxu0 %v603
        %622 = vmatprep.subr.bf16.mxu0 0
        %623 = vmatpush1.bf16.msra.mxu0 %v604
        %624 = vmatprep.subr.bf16.mxu0 0
        %625 = vmatpush1.bf16.msra.mxu0 %v605
        %626 = vmatprep.subr.bf16.mxu0 0
        %627 = vmatpush1.bf16.msra.mxu0 %v606
        %628 = vmatprep.subr.bf16.mxu0 0
        %629 = vmatpush1.bf16.msra.mxu0 %v607
        %630 = vmatprep.subr.bf16.mxu0 0
        %631 = vmatpush1.bf16.msra.mxu0 %v608
        %632 = vmatprep.subr.bf16.mxu0 0
        %633 = vmatpush1.bf16.msra.mxu0 %v609
        %634 = vmatprep.subr.bf16.mxu0 0
        %635 = vmatpush1.bf16.msra.mxu0 0
        %636 = vmatprep.subr.bf16.mxu0 0
        %637 = vmatpush1.bf16.msra.mxu0 0
        %638 = vmatprep.subr.bf16.mxu0 0
        %639 = vmatpush1.bf16.msra.mxu0 0
        %640 = vmatprep.subr.bf16.mxu0 0
        %641 = vmatpush1.bf16.msra.mxu0 0
        %642 = vmatprep.subr.bf16.mxu0 0
        %643 = vmatpush1.bf16.msra.mxu0 0
        %644 = vmatprep.subr.bf16.mxu0 0
        %645 = vmatpush1.bf16.msra.mxu0 0
        %646 = vmatprep.subr.bf16.mxu0 0
        %647 = vmatpush1.bf16.msra.mxu0 0
        %648 = vmatprep.subr.bf16.mxu0 0
        %649 = vmatpush1.bf16.msra.mxu0 0
        %650 = vmatprep.mubr.bf16.mxu0 0
        %651 = vmatmul.mubr.bf16.gmra.mrb[0].mxu0 %v546
        %v652 = vpop.f32.mrb[0].mxu0
        %v653 = vadd.f32 0.0, %v652
        %v654 = vpop.f32.mrb[0].mxu0
        %v655 = vpop.f32.mrb[0].mxu0
        %v656 = vadd.f32 0.0, %v655
        %v657 = vpop.f32.mrb[0].mxu0
        %658 = vmatprep.mubr.bf16.mxu0 0
        %659 = vmatmul.mubr.bf16.gmra.mrb[0].mxu0 %v547
        %v660 = vpop.f32.mrb[0].mxu0
        %v661 = vadd.f32 0.0, %v660
        %v662 = vpop.f32.mrb[0].mxu0
        %v663 = vpop.f32.mrb[0].mxu0
        %v664 = vadd.f32 0.0, %v663
        %v665 = vpop.f32.mrb[0].mxu0
        %666 = vmatprep.mubr.bf16.mxu0 0
        %667 = vmatmul.mubr.bf16.gmra.mrb[0].mxu0 %v548
        %v668 = vpop.f32.mrb[0].mxu0
        %v669 = vadd.f32 0.0, %v668
        %v670 = vpop.f32.mrb[0].mxu0
        %v671 = vpop.f32.mrb[0].mxu0
        %v672 = vadd.f32 0.0, %v671
        %v673 = vpop.f32.mrb[0].mxu0
        %674 = vmatprep.mubr.bf16.mxu0 0
        %675 = vmatmul.mubr.bf16.gmra.mrb[0].mxu0 %v549
        %v676 = vpop.f32.mrb[0].mxu0
        %v677 = vadd.f32 0.0, %v676
        %v678 = vpop.f32.mrb[0].mxu0
        %v679 = vpop.f32.mrb[0].mxu0
        %v680 = vadd.f32 0.0, %v679
        %v681 = vpop.f32.mrb[0].mxu0
        %682 = vmatprep.mubr.bf16.mxu0 0
        %683 = vmatmul.mubr.bf16.gmra.mrb[0].mxu0 %v550
        %v684 = vpop.f32.mrb[0].mxu0
        %v685 = vadd.f32 0.0, %v684
        %v686 = vpop.f32.mrb[0].mxu0
        %v687 = vpop.f32.mrb[0].mxu0
        %v688 = vadd.f32 0.0, %v687
        %v689 = vpop.f32.mrb[0].mxu0
        %690 = vmatprep.mubr.bf16.mxu0 0
        %691 = vmatmul.mubr.bf16.gmra.mrb[0].mxu0 %v551
        %v692 = vpop.f32.mrb[0].mxu0
        %v693 = vadd.f32 0.0, %v692
        %v694 = vpop.f32.mrb[0].mxu0
        %v695 = vpop.f32.mrb[0].mxu0
        %v696 = vadd.f32 0.0, %v695
        %v697 = vpop.f32.mrb[0].mxu0
        %698 = vmatprep.mubr.bf16.mxu0 0
        %699 = vmatmul.mubr.bf16.gmra.mrb[0].mxu0 %v552
        %v700 = vpop.f32.mrb[0].mxu0
        %v701 = vadd.f32 0.0, %v700
        %v702 = vpop.f32.mrb[0].mxu0
        %v703 = vpop.f32.mrb[0].mxu0
        %v704 = vadd.f32 0.0, %v703
        %v705 = vpop.f32.mrb[0].mxu0
        %706 = vmatprep.mubr.bf16.mxu0 0
        %707 = vmatmul.mubr.bf16.gmra.mrb[0].mxu0 %v553
        %v708 = vpop.f32.mrb[0].mxu0
        %v709 = vadd.f32 0.0, %v708
        %v710 = vpop.f32.mrb[0].mxu0
        %v711 = vpop.f32.mrb[0].mxu0
        %v712 = vadd.f32 0.0, %v711
        %v713 = vpop.f32.mrb[0].mxu0
        %714 = vdwg.mxu0
        %v715 = vadd.f32 %v530, %v653
        %v716 = vadd.f32 %v531, %v656
        %v717 = vadd.f32 %v532, %v661
        %v718 = vadd.f32 %v533, %v664
        %v719 = vadd.f32 %v534, %v669
        %v720 = vadd.f32 %v535, %v672
        %v721 = vadd.f32 %v536, %v677
        %v722 = vadd.f32 %v537, %v680
        %v723 = vadd.f32 %v538, %v685
        %v724 = vadd.f32 %v539, %v688
        %v725 = vadd.f32 %v540, %v693
        %v726 = vadd.f32 %v541, %v696
        %v727 = vadd.f32 %v542, %v701
        %v728 = vadd.f32 %v543, %v704
        %v729 = vadd.f32 %v544, %v709
        %v730 = vadd.f32 %v545, %v712
        %731 = vst [vmem:[#allocation2] sm:$0xff] %v715
        %732 = vst [vmem:[#allocation2 + $0x8] sm:$0xff] %v716
        %733 = vst [vmem:[#allocation2 + $0x10] sm:$0xff] %v717
        %734 = vst [vmem:[#allocation2 + $0x18] sm:$0xff] %v718
        %735 = vst [vmem:[#allocation2 + $0x20] sm:$0xff] %v719
        %736 = vst [vmem:[#allocation2 + $0x28] sm:$0xff] %v720
        %737 = vst [vmem:[#allocation2 + $0x30] sm:$0xff] %v721
        %738 = vst [vmem:[#allocation2 + $0x38] sm:$0xff] %v722
        %739 = vst [vmem:[#allocation2 + $0x40] sm:$0xff] %v723
        %740 = vst [vmem:[#allocation2 + $0x48] sm:$0xff] %v724
        %741 = vst [vmem:[#allocation2 + $0x50] sm:$0xff] %v725
        %742 = vst [vmem:[#allocation2 + $0x58] sm:$0xff] %v726
        %743 = vst [vmem:[#allocation2 + $0x60] sm:$0xff] %v727
        %744 = vst [vmem:[#allocation2 + $0x68] sm:$0xff] %v728
        %745 = vst [vmem:[#allocation2 + $0x70] sm:$0xff] %v729
        %746 = vst [vmem:[#allocation2 + $0x78] sm:$0xff] %v730
        %p747 = scmp.eq.s32.totalorder %s26, 3
        // Predicated region
        $region57: #{tpu_custom_call.1} parent=39 // pred_check
          %p748 = pneg %p747
        $region58: #{tpu_custom_call.1} parent=39 // pred_check_branch
          %750 = sbr.rel (%p748) target = $region60
        $region59: #{tpu_custom_call.1} parent=39 // pred_region
          %s751 = smul.u32 %s25, 128
          %s752 = sshra.s32 %s751, 3
          %s753 = sand.u32 %s751, 7
          %s754 = smul.addr %s752, 4
          %s755 = scalar_lea.vmem [#allocation3], %s754
          %v756 = vld [vmem:[%s755] sm:$0xf]
          %v757 = vld [vmem:[%s755 + $0x4] sm:$0xf]
          %v758 = vld [vmem:[%s755 + $0x8] sm:$0xf]
          %v759 = vld [vmem:[%s755 + $0xc] sm:$0xf]
          %v760 = vld [vmem:[%s755 + $0x10] sm:$0xf]
          %v761 = vld [vmem:[%s755 + $0x14] sm:$0xf]
          %v762 = vld [vmem:[%s755 + $0x18] sm:$0xf]
          %v763 = vld [vmem:[%s755 + $0x1c] sm:$0xf]
          %v764 = vld [vmem:[%s755 + $0x20] sm:$0xf]
          %v765 = vld [vmem:[%s755 + $0x24] sm:$0xf]
          %v766 = vld [vmem:[%s755 + $0x28] sm:$0xf]
          %v767 = vld [vmem:[%s755 + $0x2c] sm:$0xf]
          %v768 = vld [vmem:[%s755 + $0x30] sm:$0xf]
          %v769 = vld [vmem:[%s755 + $0x34] sm:$0xf]
          %v770 = vld [vmem:[%s755 + $0x38] sm:$0xf]
          %v771 = vld [vmem:[%s755 + $0x3c] sm:$0xf]
          %v772 = vld [vmem:[#allocation2] sm:$0xff]
          %v773 = vld [vmem:[#allocation2 + $0x8] sm:$0xff]
          %v774 = vld [vmem:[#allocation2 + $0x10] sm:$0xff]
          %v775 = vld [vmem:[#allocation2 + $0x18] sm:$0xff]
          %v776 = vld [vmem:[#allocation2 + $0x20] sm:$0xff]
          %v777 = vld [vmem:[#allocation2 + $0x28] sm:$0xff]
          %v778 = vld [vmem:[#allocation2 + $0x30] sm:$0xff]
          %v779 = vld [vmem:[#allocation2 + $0x38] sm:$0xff]
          %v780 = vld [vmem:[#allocation2 + $0x40] sm:$0xff]
          %v781 = vld [vmem:[#allocation2 + $0x48] sm:$0xff]
          %v782 = vld [vmem:[#allocation2 + $0x50] sm:$0xff]
          %v783 = vld [vmem:[#allocation2 + $0x58] sm:$0xff]
          %v784 = vld [vmem:[#allocation2 + $0x60] sm:$0xff]
          %v785 = vld [vmem:[#allocation2 + $0x68] sm:$0xff]
          %v786 = vld [vmem:[#allocation2 + $0x70] sm:$0xff]
          %v787 = vld [vmem:[#allocation2 + $0x78] sm:$0xff]
          %v788 = vld [vmem:[%s333] sm:$0xff]
          %v789 = vld [vmem:[%s333 + $0x8] sm:$0xff]
          %v790 = vld [vmem:[%s333 + $0x10] sm:$0xff]
          %v791 = vld [vmem:[%s333 + $0x18] sm:$0xff]
          %v792 = vld [vmem:[%s333 + $0x20] sm:$0xff]
          %v793 = vld [vmem:[%s333 + $0x28] sm:$0xff]
          %v794 = vld [vmem:[%s333 + $0x30] sm:$0xff]
          %v795 = vld [vmem:[%s333 + $0x38] sm:$0xff]
          %v796 = vld [vmem:[%s333 + $0x40] sm:$0xff]
          %v797 = vld [vmem:[%s333 + $0x48] sm:$0xff]
          %v798 = vld [vmem:[%s333 + $0x50] sm:$0xff]
          %v799 = vld [vmem:[%s333 + $0x58] sm:$0xff]
          %v800 = vld [vmem:[%s333 + $0x60] sm:$0xff]
          %v801 = vld [vmem:[%s333 + $0x68] sm:$0xff]
          %v802 = vld [vmem:[%s333 + $0x70] sm:$0xff]
          %v803 = vld [vmem:[%s333 + $0x78] sm:$0xff]
          %805 = vset.pattern.permute.xlu0 0
          %806 = vperm.xlu0 %805, %v788
          %v807 = vpop.permute.xlu0 %806
          %810 = vset.pattern.permute.xlu0 0
          %811 = vperm.xlu0 %810, %v789
          %v812 = vpop.permute.xlu0 %811
          %815 = vset.pattern.permute.xlu0 0
          %816 = vperm.xlu0 %815, %v790
          %v817 = vpop.permute.xlu0 %816
          %820 = vset.pattern.permute.xlu0 0
          %821 = vperm.xlu0 %820, %v791
          %v822 = vpop.permute.xlu0 %821
          %825 = vset.pattern.permute.xlu0 0
          %826 = vperm.xlu0 %825, %v792
          %v827 = vpop.permute.xlu0 %826
          %830 = vset.pattern.permute.xlu0 0
          %831 = vperm.xlu0 %830, %v793
          %v832 = vpop.permute.xlu0 %831
          %835 = vset.pattern.permute.xlu0 0
          %836 = vperm.xlu0 %835, %v794
          %v837 = vpop.permute.xlu0 %836
          %840 = vset.pattern.permute.xlu0 0
          %841 = vperm.xlu0 %840, %v795
          %v842 = vpop.permute.xlu0 %841
          %845 = vset.pattern.permute.xlu0 0
          %846 = vperm.xlu0 %845, %v796
          %v847 = vpop.permute.xlu0 %846
          %850 = vset.pattern.permute.xlu0 0
          %851 = vperm.xlu0 %850, %v797
          %v852 = vpop.permute.xlu0 %851
          %855 = vset.pattern.permute.xlu0 0
          %856 = vperm.xlu0 %855, %v798
          %v857 = vpop.permute.xlu0 %856
          %860 = vset.pattern.permute.xlu0 0
          %861 = vperm.xlu0 %860, %v799
          %v862 = vpop.permute.xlu0 %861
          %865 = vset.pattern.permute.xlu0 0
          %866 = vperm.xlu0 %865, %v800
          %v867 = vpop.permute.xlu0 %866
          %870 = vset.pattern.permute.xlu0 0
          %871 = vperm.xlu0 %870, %v801
          %v872 = vpop.permute.xlu0 %871
          %875 = vset.pattern.permute.xlu0 0
          %876 = vperm.xlu0 %875, %v802
          %v877 = vpop.permute.xlu0 %876
          %880 = vset.pattern.permute.xlu0 0
          %881 = vperm.xlu0 %880, %v803
          %v882 = vpop.permute.xlu0 %881
          %v884 = vmul.f32 %v772, %v807
          %v885 = vmul.f32 %v773, %v812
          %v886 = vmul.f32 %v774, %v817
          %v887 = vmul.f32 %v775, %v822
          %v888 = vmul.f32 %v776, %v827
          %v889 = vmul.f32 %v777, %v832
          %v890 = vmul.f32 %v778, %v837
          %v891 = vmul.f32 %v779, %v842
          %v892 = vmul.f32 %v780, %v847
          %v893 = vmul.f32 %v781, %v852
          %v894 = vmul.f32 %v782, %v857
          %v895 = vmul.f32 %v783, %v862
          %v896 = vmul.f32 %v784, %v867
          %v897 = vmul.f32 %v785, %v872
          %v898 = vmul.f32 %v786, %v877
          %v899 = vmul.f32 %v787, %v882
          %v900 = vld [vmem:[#allocation8] sm:$0xf]
          %v901 = vld [vmem:[#allocation8 + $0x4] sm:$0xf]
          %v902 = vld [vmem:[#allocation8 + $0x8] sm:$0xf]
          %v903 = vld [vmem:[#allocation8 + $0xc] sm:$0xf]
          %v904 = vld [vmem:[#allocation8 + $0x10] sm:$0xf]
          %v905 = vld [vmem:[#allocation8 + $0x14] sm:$0xf]
          %v906 = vld [vmem:[#allocation8 + $0x18] sm:$0xf]
          %v907 = vld [vmem:[#allocation8 + $0x1c] sm:$0xf]
          %v908 = vld [vmem:[#allocation8 + $0x20] sm:$0xf]
          %v909 = vld [vmem:[#allocation8 + $0x24] sm:$0xf]
          %v910 = vld [vmem:[#allocation8 + $0x28] sm:$0xf]
          %v911 = vld [vmem:[#allocation8 + $0x2c] sm:$0xf]
          %v912 = vld [vmem:[#allocation8 + $0x30] sm:$0xf]
          %v913 = vld [vmem:[#allocation8 + $0x34] sm:$0xf]
          %v914 = vld [vmem:[#allocation8 + $0x38] sm:$0xf]
          %v915 = vld [vmem:[#allocation8 + $0x3c] sm:$0xf]
          %v932 = vunpack.c.l.b16 %v756
          %v933 = vunpack.c.l.b16 %v757
          %v934 = vunpack.c.l.b16 %v758
          %v935 = vunpack.c.l.b16 %v759
          %v936 = vunpack.c.l.b16 %v760
          %v937 = vunpack.c.l.b16 %v761
          %v938 = vunpack.c.l.b16 %v762
          %v939 = vunpack.c.l.b16 %v763
          %v940 = vunpack.c.l.b16 %v764
          %v941 = vunpack.c.l.b16 %v765
          %v942 = vunpack.c.l.b16 %v766
          %v943 = vunpack.c.l.b16 %v767
          %v944 = vunpack.c.l.b16 %v768
          %v945 = vunpack.c.l.b16 %v769
          %v946 = vunpack.c.l.b16 %v770
          %v947 = vunpack.c.l.b16 %v771
          %v948 = vpack.c.b16 %v933, %v932
          %v949 = vpack.c.b16 %v935, %v934
          %v950 = vpack.c.b16 %v937, %v936
          %v951 = vpack.c.b16 %v939, %v938
          %v952 = vpack.c.b16 %v941, %v940
          %v953 = vpack.c.b16 %v943, %v942
          %v954 = vpack.c.b16 %v945, %v944
          %v955 = vpack.c.b16 %v947, %v946
          %v980 = vunpack.c.l.b16 %v900
          %v981 = vunpack.c.l.b16 %v901
          %v982 = vunpack.c.l.b16 %v902
          %v983 = vunpack.c.l.b16 %v903
          %v984 = vunpack.c.l.b16 %v904
          %v985 = vunpack.c.l.b16 %v905
          %v986 = vunpack.c.l.b16 %v906
          %v987 = vunpack.c.l.b16 %v907
          %v988 = vunpack.c.l.b16 %v908
          %v989 = vunpack.c.l.b16 %v909
          %v990 = vunpack.c.l.b16 %v910
          %v991 = vunpack.c.l.b16 %v911
          %v992 = vunpack.c.l.b16 %v912
          %v993 = vunpack.c.l.b16 %v913
          %v994 = vunpack.c.l.b16 %v914
          %v995 = vunpack.c.l.b16 %v915
          %v996 = vpack.c.b16 %v981, %v980
          %v997 = vpack.c.b16 %v983, %v982
          %v998 = vpack.c.b16 %v985, %v984
          %v999 = vpack.c.b16 %v987, %v986
          %v1000 = vpack.c.b16 %v989, %v988
          %v1001 = vpack.c.b16 %v991, %v990
          %v1002 = vpack.c.b16 %v993, %v992
          %v1003 = vpack.c.b16 %v995, %v994
          %1012 = vmatprep.subr.bf16.mxu0 0
          %1013 = vmatpush1.bf16.msra.mxu0 %v996
          %1014 = vmatprep.subr.bf16.mxu0 0
          %1015 = vmatpush1.bf16.msra.mxu0 %v997
          %1016 = vmatprep.subr.bf16.mxu0 0
          %1017 = vmatpush1.bf16.msra.mxu0 %v998
          %1018 = vmatprep.subr.bf16.mxu0 0
          %1019 = vmatpush1.bf16.msra.mxu0 %v999
          %1020 = vmatprep.subr.bf16.mxu0 0
          %1021 = vmatpush1.bf16.msra.mxu0 %v1000
          %1022 = vmatprep.subr.bf16.mxu0 0
          %1023 = vmatpush1.bf16.msra.mxu0 %v1001
          %1024 = vmatprep.subr.bf16.mxu0 0
          %1025 = vmatpush1.bf16.msra.mxu0 %v1002
          %1026 = vmatprep.subr.bf16.mxu0 0
          %1027 = vmatpush1.bf16.msra.mxu0 %v1003
          %1028 = vmatprep.subr.bf16.mxu0 0
          %1029 = vmatpush1.bf16.msra.mxu0 0
          %1030 = vmatprep.subr.bf16.mxu0 0
          %1031 = vmatpush1.bf16.msra.mxu0 0
          %1032 = vmatprep.subr.bf16.mxu0 0
          %1033 = vmatpush1.bf16.msra.mxu0 0
          %1034 = vmatprep.subr.bf16.mxu0 0
          %1035 = vmatpush1.bf16.msra.mxu0 0
          %1036 = vmatprep.subr.bf16.mxu0 0
          %1037 = vmatpush1.bf16.msra.mxu0 0
          %1038 = vmatprep.subr.bf16.mxu0 0
          %1039 = vmatpush1.bf16.msra.mxu0 0
          %1040 = vmatprep.subr.bf16.mxu0 0
          %1041 = vmatpush1.bf16.msra.mxu0 0
          %1042 = vmatprep.subr.bf16.mxu0 0
          %1043 = vmatpush1.bf16.msra.mxu0 0
          %1044 = vmatprep.mubr.bf16.mxu0 0
          %1045 = vmatmul.mubr.bf16.gmra.mrb[0].mxu0 %v948
          %v1046 = vpop.f32.mrb[0].mxu0
          %v1047 = vadd.f32 0.0, %v1046
          %v1048 = vpop.f32.mrb[0].mxu0
          %v1049 = vpop.f32.mrb[0].mxu0
          %v1050 = vadd.f32 0.0, %v1049
          %v1051 = vpop.f32.mrb[0].mxu0
          %1052 = vmatprep.mubr.bf16.mxu0 0
          %1053 = vmatmul.mubr.bf16.gmra.mrb[0].mxu0 %v949
          %v1054 = vpop.f32.mrb[0].mxu0
          %v1055 = vadd.f32 0.0, %v1054
          %v1056 = vpop.f32.mrb[0].mxu0
          %v1057 = vpop.f32.mrb[0].mxu0
          %v1058 = vadd.f32 0.0, %v1057
          %v1059 = vpop.f32.mrb[0].mxu0
          %1060 = vmatprep.mubr.bf16.mxu0 0
          %1061 = vmatmul.mubr.bf16.gmra.mrb[0].mxu0 %v950
          %v1062 = vpop.f32.mrb[0].mxu0
          %v1063 = vadd.f32 0.0, %v1062
          %v1064 = vpop.f32.mrb[0].mxu0
          %v1065 = vpop.f32.mrb[0].mxu0
          %v1066 = vadd.f32 0.0, %v1065
          %v1067 = vpop.f32.mrb[0].mxu0
          %1068 = vmatprep.mubr.bf16.mxu0 0
          %1069 = vmatmul.mubr.bf16.gmra.mrb[0].mxu0 %v951
          %v1070 = vpop.f32.mrb[0].mxu0
          %v1071 = vadd.f32 0.0, %v1070
          %v1072 = vpop.f32.mrb[0].mxu0
          %v1073 = vpop.f32.mrb[0].mxu0
          %v1074 = vadd.f32 0.0, %v1073
          %v1075 = vpop.f32.mrb[0].mxu0
          %1076 = vmatprep.mubr.bf16.mxu0 0
          %1077 = vmatmul.mubr.bf16.gmra.mrb[0].mxu0 %v952
          %v1078 = vpop.f32.mrb[0].mxu0
          %v1079 = vadd.f32 0.0, %v1078
          %v1080 = vpop.f32.mrb[0].mxu0
          %v1081 = vpop.f32.mrb[0].mxu0
          %v1082 = vadd.f32 0.0, %v1081
          %v1083 = vpop.f32.mrb[0].mxu0
          %1084 = vmatprep.mubr.bf16.mxu0 0
          %1085 = vmatmul.mubr.bf16.gmra.mrb[0].mxu0 %v953
          %v1086 = vpop.f32.mrb[0].mxu0
          %v1087 = vadd.f32 0.0, %v1086
          %v1088 = vpop.f32.mrb[0].mxu0
          %v1089 = vpop.f32.mrb[0].mxu0
          %v1090 = vadd.f32 0.0, %v1089
          %v1091 = vpop.f32.mrb[0].mxu0
          %1092 = vmatprep.mubr.bf16.mxu0 0
          %1093 = vmatmul.mubr.bf16.gmra.mrb[0].mxu0 %v954
          %v1094 = vpop.f32.mrb[0].mxu0
          %v1095 = vadd.f32 0.0, %v1094
          %v1096 = vpop.f32.mrb[0].mxu0
          %v1097 = vpop.f32.mrb[0].mxu0
          %v1098 = vadd.f32 0.0, %v1097
          %v1099 = vpop.f32.mrb[0].mxu0
          %1100 = vmatprep.mubr.bf16.mxu0 0
          %1101 = vmatmul.mubr.bf16.gmra.mrb[0].mxu0 %v955
          %v1102 = vpop.f32.mrb[0].mxu0
          %v1103 = vadd.f32 0.0, %v1102
          %v1104 = vpop.f32.mrb[0].mxu0
          %v1105 = vpop.f32.mrb[0].mxu0
          %v1106 = vadd.f32 0.0, %v1105
          %v1107 = vpop.f32.mrb[0].mxu0
          %1108 = vdwg.mxu0
          %v1109 = vadd.f32 %v884, %v1047
          %v1110 = vadd.f32 %v885, %v1050
          %v1111 = vadd.f32 %v886, %v1055
          %v1112 = vadd.f32 %v887, %v1058
          %v1113 = vadd.f32 %v888, %v1063
          %v1114 = vadd.f32 %v889, %v1066
          %v1115 = vadd.f32 %v890, %v1071
          %v1116 = vadd.f32 %v891, %v1074
          %v1117 = vadd.f32 %v892, %v1079
          %v1118 = vadd.f32 %v893, %v1082
          %v1119 = vadd.f32 %v894, %v1087
          %v1120 = vadd.f32 %v895, %v1090
          %v1121 = vadd.f32 %v896, %v1095
          %v1122 = vadd.f32 %v897, %v1098
          %v1123 = vadd.f32 %v898, %v1103
          %v1124 = vadd.f32 %v899, %v1106
          %v1125 = vmax.f32 %v1109, 0.0
          %v1126 = vmax.f32 %v1110, 0.0
          %v1127 = vmax.f32 %v1111, 0.0
          %v1128 = vmax.f32 %v1112, 0.0
          %v1129 = vmax.f32 %v1113, 0.0
          %v1130 = vmax.f32 %v1114, 0.0
          %v1131 = vmax.f32 %v1115, 0.0
          %v1132 = vmax.f32 %v1116, 0.0
          %v1133 = vmax.f32 %v1117, 0.0
          %v1134 = vmax.f32 %v1118, 0.0
          %v1135 = vmax.f32 %v1119, 0.0
          %v1136 = vmax.f32 %v1120, 0.0
          %v1137 = vmax.f32 %v1121, 0.0
          %v1138 = vmax.f32 %v1122, 0.0
          %v1139 = vmax.f32 %v1123, 0.0
          %v1140 = vmax.f32 %v1124, 0.0
          %v1141 = vpack.c.bf16 %v1126, %v1125
          %v1142 = vpack.c.bf16 %v1128, %v1127
          %v1143 = vpack.c.bf16 %v1130, %v1129
          %v1144 = vpack.c.bf16 %v1132, %v1131
          %v1145 = vpack.c.bf16 %v1134, %v1133
          %v1146 = vpack.c.bf16 %v1136, %v1135
          %v1147 = vpack.c.bf16 %v1138, %v1137
          %v1148 = vpack.c.bf16 %v1140, %v1139
          %v1157 = vunpack.c.l.b16 %v1141
          %v1158 = vunpack.c.h.b16 %v1141
          %v1159 = vunpack.c.l.b16 %v1142
          %v1160 = vunpack.c.h.b16 %v1142
          %v1161 = vunpack.c.l.b16 %v1143
          %v1162 = vunpack.c.h.b16 %v1143
          %v1163 = vunpack.c.l.b16 %v1144
          %v1164 = vunpack.c.h.b16 %v1144
          %v1165 = vunpack.c.l.b16 %v1145
          %v1166 = vunpack.c.h.b16 %v1145
          %v1167 = vunpack.c.l.b16 %v1146
          %v1168 = vunpack.c.h.b16 %v1146
          %v1169 = vunpack.c.l.b16 %v1147
          %v1170 = vunpack.c.h.b16 %v1147
          %v1171 = vunpack.c.l.b16 %v1148
          %v1172 = vunpack.c.h.b16 %v1148
          %v1173 = vpack.c.b16 %v1157, %v1157
          %v1174 = vpack.c.b16 %v1158, %v1158
          %v1175 = vpack.c.b16 %v1159, %v1159
          %v1176 = vpack.c.b16 %v1160, %v1160
          %v1177 = vpack.c.b16 %v1161, %v1161
          %v1178 = vpack.c.b16 %v1162, %v1162
          %v1179 = vpack.c.b16 %v1163, %v1163
          %v1180 = vpack.c.b16 %v1164, %v1164
          %v1181 = vpack.c.b16 %v1165, %v1165
          %v1182 = vpack.c.b16 %v1166, %v1166
          %v1183 = vpack.c.b16 %v1167, %v1167
          %v1184 = vpack.c.b16 %v1168, %v1168
          %v1185 = vpack.c.b16 %v1169, %v1169
          %v1186 = vpack.c.b16 %v1170, %v1170
          %v1187 = vpack.c.b16 %v1171, %v1171
          %v1188 = vpack.c.b16 %v1172, %v1172
          %1205 = vst [vmem:[#allocation9] sm:$0xf] %v1173
          %1206 = vst [vmem:[#allocation9 + $0x4] sm:$0xf] %v1174
          %1207 = vst [vmem:[#allocation9 + $0x8] sm:$0xf] %v1175
          %1208 = vst [vmem:[#allocation9 + $0xc] sm:$0xf] %v1176
          %1209 = vst [vmem:[#allocation9 + $0x10] sm:$0xf] %v1177
          %1210 = vst [vmem:[#allocation9 + $0x14] sm:$0xf] %v1178
          %1211 = vst [vmem:[#allocation9 + $0x18] sm:$0xf] %v1179
          %1212 = vst [vmem:[#allocation9 + $0x1c] sm:$0xf] %v1180
          %1213 = vst [vmem:[#allocation9 + $0x20] sm:$0xf] %v1181
          %1214 = vst [vmem:[#allocation9 + $0x24] sm:$0xf] %v1182
          %1215 = vst [vmem:[#allocation9 + $0x28] sm:$0xf] %v1183
          %1216 = vst [vmem:[#allocation9 + $0x2c] sm:$0xf] %v1184
          %1217 = vst [vmem:[#allocation9 + $0x30] sm:$0xf] %v1185
          %1218 = vst [vmem:[#allocation9 + $0x34] sm:$0xf] %v1186
          %1219 = vst [vmem:[#allocation9 + $0x38] sm:$0xf] %v1187
          %1220 = vst [vmem:[#allocation9 + $0x3c] sm:$0xf] %v1188
        $region60: #{tpu_custom_call.1} parent=39 // pred_fallthru
          _
        // Predicated region
        $region61: #{tpu_custom_call.1} parent=39 // pred_check
          %p1221 = pneg %p173
        $region62: #{tpu_custom_call.1} parent=39 // pred_check_branch
          %1223 = sbr.rel (%p1221) target = $region64
        $region63: #{tpu_custom_call.1} parent=39 // pred_region
          %s1224 = smul.u32 16, %s25
          %s1226 = ssub.s32 1024, 1024
          %1227 = vsyncadd [#allocation5], %s1226
          %s1228 = smul.addr %s1224, 64
          %s1229 = scalar_lea.hbm %s5, %s1228
          %s1230 = sshll.u32 [#allocation9], 4
          %s1231 = int_to_ptr.vmem [resolvable:$true] %s1230
          %1236 = dma.vmem_to_hbm [thread:$0]  %s1231, 1024, %s1229, [#allocation5], 64, 64, 4
        $region64: #{tpu_custom_call.1} parent=39 // pred_fallthru
          _
        // Predicated region
        $region65: #{tpu_custom_call.1} parent=39 // pred_check
          %p1237 = pneg %p173
        $region66: #{tpu_custom_call.1} parent=39 // pred_check_branch
          %1239 = sbr.rel (%p1237) target = $region68
        $region67: #{tpu_custom_call.1} parent=39 // pred_region
          %1240 = dma.done [#allocation5], 1024
        $region68: #{tpu_custom_call.1} parent=39 // pred_fallthru
          _
      $region40: #{tpu_custom_call.1} parent=5 // pred_fallthru
        _
      %p1241 = scmp.le.s32.totalorder 2, %s16
      // Predicated region
      $region69: #{tpu_custom_call.1} parent=5 // pred_check
        %p1242 = pneg %p1241
      $region70: #{tpu_custom_call.1} parent=5 // pred_check_branch
        %1244 = sbr.rel (%p1242) target = $region72
      $region71: #{tpu_custom_call.1} parent=5 // pred_region
        %s1245 = ssub.s32 %s16, 2
      $region72: #{tpu_custom_call.1} parent=5 // pred_fallthru
        _
    $region6: #{tpu_custom_call.1} parent=1 // loop_footer
      %s20 = sadd.s32 1, %s16
    $region7: #{tpu_custom_call.1} parent=1 // loop_footer_branch
      %15 = sbr.rel target = $region3
    $region8: #{tpu_custom_call.1} parent=1 // loop_exit
      _
    %1246 = vsyncpa [#allocation4], 1
    %s1247 = scalar_lea.sflag [#allocation4], 1
    %1248 = vsyncpa %s1247, 1
    %1249 = vsyncpa [#allocation7], 1
    %s1250 = scalar_lea.sflag [#allocation7], 1
    %1251 = vsyncpa %s1250, 1
    %1252 = vsyncpa [#allocation5], 1
    %s1253 = scalar_lea.sflag [#allocation5], 1
    %1254 = vsyncpa %s1253, 1

</llo_original>
